<compile_context>
chip_gen: v7x
topology: tpu7x:2x2x1
jax: 0.10.0
libtpu: 0.0.40
codegen_flags: <defaults>
</compile_context>

<pallas_src>
import functools

import jax
import jax.numpy as jnp
from jax.experimental import pallas as pl
from jax.experimental.pallas import tpu as pltpu

LANES = 128
ACC_ROWS = 512          # fixed pass-1 accumulator height (decoupled from tile size)
EPS = 1e-6


def _cdiv(a, b):
    return -(-a // b)


def _round_up(a, b):
    return _cdiv(a, b) * b


def _sublane_multiple(dtype):
    # Packed sub-32-bit dtypes need 8 * (32 / bits) rows per sublane tile.
    return 8 * max(1, 4 // jnp.dtype(dtype).itemsize)


@functools.lru_cache(maxsize=None)
def _hw_config():
    """Returns (vmem_limit_bytes, fused_max_elems, tile_rows) per TPU generation."""
    try:
        vmem_phys = int(pltpu.get_tpu_info().vmem_capacity_bytes)
    except Exception:
        vmem_phys = 64 * 1024 * 1024          # conservative: assume v7x-sized VMEM
    if vmem_phys >= 100 * 1024 * 1024:        # v5e / v6e: 128 MiB physical
        return 96 * 1024 * 1024, 4 * 1024 * 1024, 8192
    # v7x: 64 MiB physical per TensorCore -> keep headroom
    return 48 * 1024 * 1024, 3 * 512 * 1024, 4096


def _scales(x_min, x_max, n_levels):
    """Derive (delta, 1/delta, clip_lo, clip_hi) from (1,1) clamped min/max."""
    delta = jnp.maximum((x_max - x_min) * (1.0 / (n_levels - 1)), EPS)
    zero_point = jnp.round(-x_min / delta)
    inv_delta = 1.0 / delta                    # hoisted per tile; x * inv vs x / delta
    lo = -zero_point
    hi = float(n_levels - 1) - zero_point
    return delta, inv_delta, lo, hi


# ---------------------------------------------------------------------------
# Fused path: whole tensor resident in VMEM, single HBM read + single write.
# ---------------------------------------------------------------------------
def _fused_quant_kernel(x_ref, o_ref, *, n_levels):
    x = x_ref[...].astype(jnp.float32)                          # cast fused in-kernel
    x_min = jnp.minimum(jnp.min(x, keepdims=True), 0.0)         # (1, 1)
    x_max = jnp.maximum(jnp.max(x, keepdims=True), 0.0)         # (1, 1)
    delta, inv_delta, lo, hi = _scales(x_min, x_max, n_levels)
    o_ref[...] = (jnp.clip(jnp.round(x * inv_delta), lo, hi) * delta).astype(o_ref.dtype)


def _fused_call(x2d, out_dtype, n_levels, vmem_limit):
    return pl.pallas_call(
        functools.partial(_fused_quant_kernel, n_levels=n_levels),
        out_shape=jax.ShapeDtypeStruct(x2d.shape, out_dtype),
        compiler_params=pltpu.CompilerParams(vmem_limit_bytes=vmem_limit),
    )(x2d)


# ---------------------------------------------------------------------------
# Tiled path, pass 1: global min / max reduction (unconditional 2-core split).
# ---------------------------------------------------------------------------
def _minmax_kernel(x_ref, min_ref, max_ref, vmin_acc, vmax_acc, *,
                   tile_rows, acc_rows, t_per_core, n_tiles, nc, valid_rows):
    c = pl.program_id(0)               # TensorCore-split ("parallel") axis
    i = pl.program_id(1)               # reduction ("arbitrary") axis
    t = c * t_per_core + i             # global tile index (may overhang when odd)

    last_tile = n_tiles - 1
    ragged_rows = valid_rows - last_tile * tile_rows    # valid rows of the last tile
    ragged = ragged_rows != tile_rows                   # python bool (static)
    has_overhang = nc * t_per_core > n_tiles            # python bool (static)
    n_chunks = tile_rows // acc_rows
    pair = (n_chunks >= 2) and (n_chunks % 2 == 0)

    @pl.when(i == 0)
    def _():
        # 0 is the exact identity: x_min is clamped to <= 0, x_max to >= 0 downstream.
        vmin_acc[...] = jnp.zeros_like(vmin_acc)
        vmax_acc[...] = jnp.zeros_like(vmax_acc)

    def fold_full():
        # Fold the tile into the fixed accumulator; the 2-way tree fold halves the
        # accumulator store traffic (store-slot headroom, esp. v5e's single vst).
        step = 2 * acc_rows if pair else acc_rows
        for k in range(0, tile_rows, step):
            a = x_ref[pl.ds(k, acc_rows), :].astype(jnp.float32)
            if pair:
                b = x_ref[pl.ds(k + acc_rows, acc_rows), :].astype(jnp.float32)
                lo, hi = jnp.minimum(a, b), jnp.maximum(a, b)
            else:
                lo, hi = a, a
            vmin_acc[...] = jnp.minimum(vmin_acc[...], lo)
            vmax_acc[...] = jnp.maximum(vmax_acc[...], hi)

    def fold_masked():
        # Only runs for the single partial tile: mask padded rows with 0 (neutral).
        for k in range(0, tile_rows, acc_rows):
            a = x_ref[pl.ds(k, acc_rows), :].astype(jnp.float32)
            rid = k + jax.lax.broadcasted_iota(jnp.int32, a.shape, 0)
            a = jnp.where(rid < ragged_rows, a, 0.0)
            vmin_acc[...] = jnp.minimum(vmin_acc[...], a)
            vmax_acc[...] = jnp.maximum(vmax_acc[...], a)

    if ragged:
        @pl.when(t < last_tile)
        def _():
            fold_full()

        @pl.when(t == last_tile)
        def _():
            fold_masked()
        # t > last_tile (overhang duplicate of the clamped index_map): skipped.
    elif has_overhang:
        @pl.when(t < n_tiles)
        def _():
            fold_full()
    else:
        fold_full()

    @pl.when(i == t_per_core - 1)
    def _():
        # One cross-lane (XLU) reduce per core, broadcast into a lane-dense block.
        min_ref[...] = jnp.broadcast_to(
            jnp.min(vmin_acc[...], keepdims=True), min_ref.shape)
        max_ref[...] = jnp.broadcast_to(
            jnp.max(vmax_acc[...], keepdims=True), max_ref.shape)


# ---------------------------------------------------------------------------
# Tiled path, pass 2: elementwise fake-quant with in-kernel scale derivation.
# ---------------------------------------------------------------------------
def _fake_quant_kernel(min_ref, max_ref, x_ref, o_ref, *, n_levels):
    # Combine the per-core partials and derive the quant params in-kernel: a few
    # (1,1) ops per grid step, no XLA scalar glue / extra dispatch between passes.
    x_min = jnp.minimum(jnp.min(min_ref[...], keepdims=True), 0.0)
    x_max = jnp.maximum(jnp.max(max_ref[...], keepdims=True), 0.0)
    delta, inv_delta, lo, hi = _scales(x_min, x_max, n_levels)
    x = x_ref[...].astype(jnp.float32)                             # fused cast
    # Single store per output vreg; clip bounds already absorb the zero_point.
    o_ref[...] = (jnp.clip(jnp.round(x * inv_delta), lo, hi) * delta).astype(o_ref.dtype)


def _tiled_call(x2d, out_dtype, n_levels, vmem_limit, tile_rows_cfg):
    rows, lanes = x2d.shape
    sub = _sublane_multiple(x2d.dtype)
    tile_rows = min(tile_rows_cfg, _round_up(rows, sub))
    n_tiles = _cdiv(rows, tile_rows)
    nc = 2 if n_tiles >= 2 else 1                 # unconditional 2-TC split of pass 1
    t_per_core = _cdiv(n_tiles, nc)
    acc_rows = ACC_ROWS if tile_rows % ACC_ROWS == 0 else tile_rows

    def x_index(c, i):
        # Clamp so the overhang step (odd tile counts) never DMAs out of bounds;
        # its contribution is skipped in-kernel.
        return (jnp.minimum(c * t_per_core + i, n_tiles - 1), 0)

    # --- pass 1: per-core partial min / max ---
    part_min, part_max = pl.pallas_call(
        functools.partial(
            _minmax_kernel, tile_rows=tile_rows, acc_rows=acc_rows,
            t_per_core=t_per_core, n_tiles=n_tiles, nc=nc, valid_rows=rows),
        out_shape=(jax.ShapeDtypeStruct((1, nc * lanes), jnp.float32),
                   jax.ShapeDtypeStruct((1, nc * lanes), jnp.float32)),
        grid=(nc, t_per_core),
        in_specs=[pl.BlockSpec((tile_rows, lanes), x_index)],
        out_specs=(pl.BlockSpec((1, lanes), lambda c, i: (0, c)),
                   pl.BlockSpec((1, lanes), lambda c, i: (0, c))),
        scratch_shapes=[pltpu.VMEM((acc_rows, lanes), jnp.float32),
                        pltpu.VMEM((acc_rows, lanes), jnp.float32)],
        compiler_params=pltpu.CompilerParams(
            dimension_semantics=("parallel", "arbitrary"),
            vmem_limit_bytes=vmem_limit),
    )(x2d)

    # --- pass 2: elementwise fake-quant (partials stay resident, x is streamed) ---
    # TODO(synk): sweep pipeline_mode=pl.Buffered(3) on the x / o specs once profiled
    #             on v7x (low-risk few-percent item from the perf review).
    return pl.pallas_call(
        functools.partial(_fake_quant_kernel, n_levels=n_levels),
        out_shape=jax.ShapeDtypeStruct(x2d.shape, out_dtype),
        grid=(n_tiles,),
        in_specs=[pl.BlockSpec((1, nc * lanes), lambda i: (0, 0)),
                  pl.BlockSpec((1, nc * lanes), lambda i: (0, 0)),
                  pl.BlockSpec((tile_rows, lanes), lambda i: (i, 0))],
        out_specs=pl.BlockSpec((tile_rows, lanes), lambda i: (i, 0)),
        compiler_params=pltpu.CompilerParams(
            dimension_semantics=("parallel",),
            vmem_limit_bytes=vmem_limit),
    )(part_min, part_max, x2d)


@functools.partial(jax.jit,
                   static_argnames=("n_bits", "force_tiled", "tile_rows_override"))
def base_quantizer_forward(x, n_bits=8, force_tiled=False, tile_rows_override=None):
    """Tensor-wise uniform affine fake quantization (BaseQuantizer.forward:
    n_bits=8, sym=False, per_group=False, scale_method='min_max',
    round_mode='nearest', always_zero=False)."""
    # TODO(synk): round_mode in {'nearest_ste','stochastic','learned_hard_sigmoid'},
    #             scale_method='grid_search_lp', per_group ('channel'/'token'),
    #             sym=True / always_zero, running_stat momentum, mixed_precision /
    #             timestep_wise delta tables and the NaN/ipdb debug hooks are not
    #             implemented.
    n_levels = 2 ** n_bits
    orig_shape = x.shape
    orig_dtype = x.dtype
    vmem_limit, fused_max_elems, tile_rows_cfg = _hw_config()
    if tile_rows_override is not None:
        tile_rows_cfg = tile_rows_override

    flat = x.reshape(-1)
    total = flat.shape[0]
    pad = (-total) % LANES
    if pad:
        # TODO(synk): element counts that are not a multiple of 128 still take a
        #             host-side pad + slice; typical activation shapes never hit
        #             this. Zero padding is exact because x_min/x_max are clamped
        #             to <= 0 / >= 0 in this config.
        flat = jnp.pad(flat, (0, pad))
    rows = flat.shape[0] // LANES
    x2d = flat.reshape(rows, LANES)                  # lane-dense (rows, 128) slab

    if (not force_tiled) and rows * LANES <= fused_max_elems:
        out2d = _fused_call(x2d, orig_dtype, n_levels, vmem_limit)
    else:
        out2d = _tiled_call(x2d, orig_dtype, n_levels, vmem_limit, tile_rows_cfg)

    out = out2d.reshape(-1)
    if pad:
        out = out[:total]
    return out.reshape(orig_shape)


def _reference(x, n_bits=8):
    """Pure-JAX reference of the same forward math (divide form, like PyTorch)."""
    n_levels = 2 ** n_bits
    x32 = x.astype(jnp.float32)
    x_min = jnp.minimum(jnp.min(x32), 0.0)
    x_max = jnp.maximum(jnp.max(x32), 0.0)
    delta = jnp.maximum((x_max - x_min) / (n_levels - 1), 1e-6)
    zp = jnp.round(-x_min / delta)
    x_q = jnp.clip(jnp.round(x32 / delta) + zp, 0, n_levels - 1)
    return ((x_q - zp) * delta).astype(x.dtype), delta


def _check(y, x, n_bits=8, extra_tol=1e-5):
    ref, delta = _reference(x, n_bits)
    err = float(jnp.max(jnp.abs(y.astype(jnp.float32) - ref.astype(jnp.float32))))
    # x * (1/delta) vs x / delta may flip a value by at most one quantization level.
    assert err <= 2.0 * float(delta) + extra_tol, (tuple(x.shape), str(x.dtype), err)


if __name__ == "__main__":
    # Small activation-shaped input [B, C, H, W] -> fused single-pass path.
    x = jax.random.normal(jax.random.PRNGKey(0), (2, 4, 16, 16), dtype=jnp.float32)
    y = jax.block_until_ready(base_quantizer_forward(x, n_bits=8))
    _check(y, x)

    # Tiled two-pass path: multi-tile, odd tile count (exercises the unconditional
    # 2-core split + overhang guard) and a ragged last tile, via a small tile
    # override so the test stays small on every generation.
    x2 = jax.random.normal(jax.random.PRNGKey(1), (648, 128), dtype=jnp.float32)
    y2 = jax.block_until_ready(
        base_quantizer_forward(x2, n_bits=8, force_tiled=True, tile_rows_override=256))
    _check(y2, x2)

    # Tiled path with fused bf16 <-> f32 casts (packed-sublane input blocks).
    x3 = jax.random.normal(jax.random.PRNGKey(2), (2, 8, 128, 128), dtype=jnp.bfloat16)
    y3 = jax.block_until_ready(base_quantizer_forward(x3, n_bits=8, force_tiled=True))
    _check(y3, x3, extra_tol=1e-1)

    # Ragged element count (not a multiple of 128) -> padded fused path.
    x4 = jax.random.normal(jax.random.PRNGKey(3), (5, 7, 13), dtype=jnp.float32)
    y4 = jax.block_until_ready(base_quantizer_forward(x4, n_bits=8))
    _check(y4, x4)

    print("KERNEL_OK")
</pallas_src>

<mosaic_0001>
module attributes {stable_mosaic.version = 11 : i64} {
  func.func @_fused_quant_kernel(%arg0: memref<16x128xf32, #tpu.memory_space<vmem>>, %arg1: memref<16x128xf32, #tpu.memory_space<vmem>>) attributes {dimension_semantics = [], scalar_prefetch = 0 : i64, scratch_operands = 0 : i64, tpu.core_type = #tpu.core_type<tc>} {
    %c0 = arith.constant 0 : index
    %c0_0 = arith.constant 0 : index
    %0 = vector.load %arg0[%c0, %c0_0] : memref<16x128xf32, #tpu.memory_space<vmem>>, vector<16x128xf32>
    %1 = vector.shape_cast %0 : vector<16x128xf32> to vector<1x16x128xf32>
    %cst = arith.constant dense<0x7F800000> : vector<1xf32>
    %2 = vector.multi_reduction <minimumf>, %1, %cst [1, 2] : vector<1x16x128xf32> to vector<1xf32>
    %3 = vector.shape_cast %2 : vector<1xf32> to vector<1x1x1xf32>
    %4 = vector.extract %3[0, 0, 0] : f32 from vector<1x1x1xf32>
    %5 = vector.broadcast %4 : f32 to vector<1x1xf32>
    %cst_1 = arith.constant 0.000000e+00 : f32
    %6 = vector.broadcast %cst_1 : f32 to vector<1x1xf32>
    %7 = arith.minimumf %5, %6 : vector<1x1xf32>
    %8 = vector.shape_cast %0 : vector<16x128xf32> to vector<1x16x128xf32>
    %cst_2 = arith.constant dense<0xFF800000> : vector<1xf32>
    %9 = vector.multi_reduction <maximumf>, %8, %cst_2 [1, 2] : vector<1x16x128xf32> to vector<1xf32>
    %10 = vector.shape_cast %9 : vector<1xf32> to vector<1x1x1xf32>
    %11 = vector.extract %10[0, 0, 0] : f32 from vector<1x1x1xf32>
    %12 = vector.broadcast %11 : f32 to vector<1x1xf32>
    %cst_3 = arith.constant 0.000000e+00 : f32
    %13 = vector.broadcast %cst_3 : f32 to vector<1x1xf32>
    %14 = arith.maximumf %12, %13 : vector<1x1xf32>
    %15 = arith.subf %14, %7 : vector<1x1xf32>
    %cst_4 = arith.constant 0.00392156886 : f32
    %16 = vector.broadcast %cst_4 : f32 to vector<1x1xf32>
    %17 = arith.mulf %15, %16 : vector<1x1xf32>
    %cst_5 = arith.constant 9.99999997E-7 : f32
    %18 = vector.broadcast %cst_5 : f32 to vector<1x1xf32>
    %19 = arith.maximumf %17, %18 : vector<1x1xf32>
    %cst_6 = arith.constant 0.000000e+00 : f32
    %20 = vector.broadcast %cst_6 : f32 to vector<1x1xf32>
    %21 = arith.subf %20, %7 : vector<1x1xf32>
    %22 = arith.divf %21, %19 : vector<1x1xf32>
    %23 = math.roundeven %22 : vector<1x1xf32>
    %cst_7 = arith.constant 1.000000e+00 : f32
    %24 = vector.broadcast %cst_7 : f32 to vector<1x1xf32>
    %25 = arith.divf %24, %19 : vector<1x1xf32>
    %cst_8 = arith.constant 0.000000e+00 : f32
    %26 = vector.broadcast %cst_8 : f32 to vector<1x1xf32>
    %27 = arith.subf %26, %23 : vector<1x1xf32>
    %cst_9 = arith.constant 2.550000e+02 : f32
    %28 = vector.broadcast %cst_9 : f32 to vector<1x1xf32>
    %29 = arith.subf %28, %23 : vector<1x1xf32>
    %30 = vector.broadcast %25 : vector<1x1xf32> to vector<16x128xf32>
    %31 = arith.mulf %0, %30 : vector<16x128xf32>
    %32 = math.roundeven %31 : vector<16x128xf32>
    %33 = vector.broadcast %27 : vector<1x1xf32> to vector<16x128xf32>
    %34 = arith.maximumf %33, %32 : vector<16x128xf32>
    %35 = vector.broadcast %29 : vector<1x1xf32> to vector<16x128xf32>
    %36 = arith.minimumf %35, %34 : vector<16x128xf32>
    %37 = vector.broadcast %19 : vector<1x1xf32> to vector<16x128xf32>
    %38 = arith.mulf %36, %37 : vector<16x128xf32>
    %c0_10 = arith.constant 0 : index
    %c0_11 = arith.constant 0 : index
    %39 = vector.load %arg1[%c0_10, %c0_11] : memref<16x128xf32, #tpu.memory_space<vmem>>, vector<16x128xf32>
    tpu.vector_store %arg1[%c0_10, %c0_11], %38 {strides = array<i32>} : memref<16x128xf32, #tpu.memory_space<vmem>>, vector<16x128xf32>,
    return
  }
}

</mosaic_0001>

<llo_original>
// kernel: base_quantizer_forward.1
$region0: #{base_quantizer_forward.1}
  #allocation0 [shape = 'u32[]', space=smem, size = 0x4, offset = 0x4, fixed_abs, tag = 'smem constant byte address 0x4 - core index']
  #allocation1 [shape = 'u32[144,128]{1,0:T(1,128)}', space=vmem, size = 0x12000, scoped, tag = 'internal scratch']
  %s0 = inlined_call_operand.vmem [shape: f32[16,128], index: 0, kind: input, shape index: {}]
  %s1 = inlined_call_operand.vmem [shape: f32[16,128], index: 1, kind: output, shape index: {}]
  %s2 = sld [smem:[#allocation0]]
  $region14: #{base_quantizer_forward.1} parent=0
    _
  %s4 = ssub.s32 1, %s2
  %s5 = scalar_select 0, %s4, %s2
  // Predicated region
  $region2: #{base_quantizer_forward.1} parent=0 // pred_check
    _
  $region3: #{base_quantizer_forward.1} parent=0 // pred_check_branch
    %7 = sbr.rel (0) target = $region5
  $region4: #{base_quantizer_forward.1} parent=0 // pred_region
    _
  $region5: #{base_quantizer_forward.1} parent=0 // pred_fallthru
    _
  %v8 = vld [vmem:[%s0] sm:$0xff]
  %v9 = vld [vmem:[%s0 + $0x8] sm:$0xff]
  %v10 = vmin.f32 %v8, %v9
  %11 = vmin.xlane.f32.xlu0 %v10
  %v12 = vpop.xlane.xlu0 %11
  %v13 = vrot.slane %v12, 4
  %v14 = vmin.f32 %v12, %v13
  %v15 = vrot.slane %v14, 2
  %v16 = vmin.f32 %v14, %v15
  %v17 = vrot.slane %v16, 1
  %v18 = vmin.f32 %v16, %v17
  %s19 = vtos %v18
  %v20 = vstv %s19
  %v21 = vmin.f32 %v20, 0.0
  %v22 = vmax.f32 %v8, %v9
  %23 = vmax.xlane.f32.xlu0 %v22
  %v24 = vpop.xlane.xlu0 %23
  %v25 = vrot.slane %v24, 4
  %v26 = vmax.f32 %v24, %v25
  %v27 = vrot.slane %v26, 2
  %v28 = vmax.f32 %v26, %v27
  %v29 = vrot.slane %v28, 1
  %v30 = vmax.f32 %v28, %v29
  %s31 = vtos %v30
  %v32 = vstv %s31
  %v33 = vmax.f32 %v32, 0.0
  %v34 = vsub.f32 %v33, %v21
  %v35 = vmul.f32 %v34, 0.003921569
  %v36 = vmax.f32 %v35, 1e-06
  %v37 = vsub.f32 0.0, %v21
  %v38 = vrcp.pop %v36
  %v39 = vmul.f32 %v37, %v38
  %v40 = vround.ne.pseudo %v39
  %v41 = vmul.f32 1.0, %v38
  %v42 = vsub.f32 0.0, %v40
  %v43 = vsub.f32 255.0, %v40
  %v44 = vmul.f32 %v8, %v41
  %v45 = vmul.f32 %v9, %v41
  %v46 = vround.ne.pseudo %v44
  %v47 = vround.ne.pseudo %v45
  %v48 = vmax.f32 %v42, %v46
  %v49 = vmax.f32 %v42, %v47
  %v50 = vmin.f32 %v43, %v48
  %v51 = vmin.f32 %v43, %v49
  %v52 = vmul.f32 %v50, %v36
  %v53 = vmul.f32 %v51, %v36
  %54 = vst [vmem:[%s1] sm:$0xff] %v52
  %55 = vst [vmem:[%s1 + $0x8] sm:$0xff] %v53
  // Predicated region
  $region6: #{base_quantizer_forward.1} parent=0 // pred_check
    _
  $region7: #{base_quantizer_forward.1} parent=0 // pred_check_branch
    %57 = sbr.rel (0) target = $region9
  $region8: #{base_quantizer_forward.1} parent=0 // pred_region
    _
  $region9: #{base_quantizer_forward.1} parent=0 // pred_fallthru
    _
  // Predicated region
  $region10: #{base_quantizer_forward.1} parent=0 // pred_check
    _
  $region11: #{base_quantizer_forward.1} parent=0 // pred_check_branch
    %59 = sbr.rel (0) target = $region13
  $region12: #{base_quantizer_forward.1} parent=0 // pred_region
    _
  $region13: #{base_quantizer_forward.1} parent=0 // pred_fallthru
    _

</llo_original>
